<compile_context>
chip_gen: v6e
topology: v6e:2x2x1
jax: 0.10.0
libtpu: 0.0.40
codegen_flags: <defaults>
</compile_context>

<pallas_src>
import functools

import jax
import jax.numpy as jnp
from jax.experimental import pallas as pl
from jax.experimental.pallas import tpu as pltpu


def _round_up(n, m):
    return ((n + m - 1) // m) * m


# ---------------------------------------------------------------------------
# Kernel (feature-major: batch rides on the 128-lane axis)
# ---------------------------------------------------------------------------
def _policy_kernel(x_ref, p_ref, out_ref, *, S, H, use_bf16):
    """One batch tile: x (S, tb) -> out (2, tb) = [tanh row; softplus row].

    Packed-slab layout (rows x 128 lanes, f32):
      [0   : H    , 0     : H      ]  W3^T              (H, H)
      [0   : H    , H     : H+S    ]  W1^T              (H, S)
      [0   : H    , H+S             ]  b1                (H,)
      [0   : H    , H+S+1           ]  b3                (H,)
      [H   : H+2  , 0     : H      ]  [Wmu^T ; Wsig^T]  (2, H)
      [H   : H+2  , H               ]  [bmu ; bsig]      (2,)
    """
    x = x_ref[...]                                        # (S, tb) f32

    # ---- fc1 + ReLU on the VPU (K = S is tiny; skip MXU fill/drain) -------
    h1 = p_ref[0:H, H + S:H + S + 1]                      # b1 column (H, 1)
    for k in range(S):                                    # static unroll, S tiny
        h1 = h1 + p_ref[0:H, H + k:H + k + 1] * x[k:k + 1, :]
    h1 = jnp.maximum(h1, 0.0)                             # (H, tb), lane-dense

    # ---- fc3 + ReLU: (H,H) @ (H,tb) on the MXU; batch on the N axis --------
    w3t = p_ref[0:H, 0:H]                                 # (H, H)
    b3 = p_ref[0:H, H + S + 1:H + S + 2]                  # (H, 1)
    if use_bf16:
        w3t = w3t.astype(jnp.bfloat16)
        h1m = h1.astype(jnp.bfloat16)
    else:
        h1m = h1
    h2 = jnp.dot(w3t, h1m, preferred_element_type=jnp.float32) + b3
    h2 = jnp.maximum(h2, 0.0)                             # (H, tb)

    # ---- fused heads: one (2,H) @ (H,tb) matmul -> (2, tb) -----------------
    wht = p_ref[H:H + 2, 0:H]                             # (2, H)
    bh = p_ref[H:H + 2, H:H + 1]                          # (2, 1)
    if use_bf16:
        wht = wht.astype(jnp.bfloat16)
        h2m = h2.astype(jnp.bfloat16)
    else:
        h2m = h2
    z = jnp.dot(wht, h2m, preferred_element_type=jnp.float32) + bh  # (2, tb)

    # Row 0 = mu (tanh), row 1 = sigma (softplus, torch semantics: beta=1,
    # threshold=20).  Separate rows -> each transcendental runs once.
    out_ref[0:1, :] = jnp.tanh(z[0:1, :])
    zs = z[1:2, :]
    out_ref[1:2, :] = jnp.where(zs > 20.0, zs,
                                jnp.log1p(jnp.exp(jnp.minimum(zs, 20.0))))


# ---------------------------------------------------------------------------
# Host-side helpers
# ---------------------------------------------------------------------------
def pack_params(params):
    """Pack all weights/biases into a single (8,128)-padded f32 slab.

    Call once when params change; pass the cached slab to policy_forward.
    """
    w1, b1, w3, b3, wm, bm, ws, bs = params
    S, H = w1.shape
    R = _round_up(H + 2, 8)
    C = _round_up(max(H + S + 2, 128), 128)

    slab = jnp.zeros((R, C), jnp.float32)
    slab = slab.at[0:H, 0:H].set(w3.T)
    slab = slab.at[0:H, H:H + S].set(w1.T)
    slab = slab.at[0:H, H + S].set(b1[0])
    slab = slab.at[0:H, H + S + 1].set(b3[0])
    slab = slab.at[H, 0:H].set(wm[:, 0])
    slab = slab.at[H + 1, 0:H].set(ws[:, 0])
    slab = slab.at[H, H].set(bm[0, 0])
    slab = slab.at[H + 1, H].set(bs[0, 0])
    return slab


@functools.partial(jax.jit,
                   static_argnames=("state_space", "hidden", "block_b", "use_bf16"))
def policy_forward(x, slab, *, state_space, hidden, block_b=2048, use_bf16=False):
    """x: (B, state_space) f32, slab: packed params -> (mu (B,1), sigma (B,1))."""
    S, H = state_space, hidden
    B = x.shape[0]

    x_t = x.T.astype(jnp.float32)                         # (S, B), feature-major

    # Batch tile: multiple of 128 (lane granularity), capped at block_b, and
    # sized so large batches keep >= ~4 grid steps for v7x megacore sharding.
    tb = min(block_b, max(128, _round_up(pl.cdiv(B, 4), 128)))
    b_pad = _round_up(B, tb)
    if b_pad != B:
        x_t = jnp.pad(x_t, ((0, 0), (0, b_pad - B)))

    kernel = functools.partial(_policy_kernel, S=S, H=H, use_bf16=use_bf16)
    out = pl.pallas_call(
        kernel,
        out_shape=jax.ShapeDtypeStruct((2, b_pad), jnp.float32),
        grid=(b_pad // tb,),
        in_specs=[
            pl.BlockSpec((S, tb), lambda i: (0, i)),      # x tiles stream per step
            pl.BlockSpec(slab.shape, lambda i: (0, 0)),   # weights stay VMEM-resident
        ],
        out_specs=pl.BlockSpec((2, tb), lambda i: (0, i)),
        compiler_params=pltpu.CompilerParams(
            dimension_semantics=("parallel",),            # megacore sharding on v7x
        ),
    )(x_t, slab)

    mu = out[0, :B][:, None]
    sigma = out[1, :B][:, None]
    return mu, sigma


def init_params(key, state_space=2, hidden=20):
    """Deterministic init mimicking PyTorch's default Linear init
    (uniform(-1/sqrt(fan_in), 1/sqrt(fan_in))); weights stored as (in, out)."""
    def linear(k, fan_in, fan_out):
        kw, kb = jax.random.split(k)
        bound = 1.0 / jnp.sqrt(fan_in)
        w = jax.random.uniform(kw, (fan_in, fan_out), jnp.float32, -bound, bound)
        b = jax.random.uniform(kb, (1, fan_out), jnp.float32, -bound, bound)
        return w, b

    k1, k3, km, ks = jax.random.split(key, 4)
    w1, b1 = linear(k1, state_space, hidden)
    w3, b3 = linear(k3, hidden, hidden)
    wm, bm = linear(km, hidden, 1)
    ws, bs = linear(ks, hidden, 1)
    return (w1, b1, w3, b3, wm, bm, ws, bs)


def reference_forward(x, params):
    w1, b1, w3, b3, wm, bm, ws, bs = params
    h1 = jax.nn.relu(x @ w1 + b1)
    h2 = jax.nn.relu(h1 @ w3 + b3)
    mu = jnp.tanh(h2 @ wm + bm)
    sigma = jax.nn.softplus(h2 @ ws + bs)
    return mu, sigma


if __name__ == "__main__":
    key = jax.random.PRNGKey(0)
    kx, kp = jax.random.split(key)

    batch = 8
    state_space = 2   # MountainCarContinuous observation space
    hidden = 20

    x = jax.random.normal(kx, (batch, state_space), jnp.float32)
    params = init_params(kp, state_space=state_space, hidden=hidden)
    slab = pack_params(params)   # packed once, hoisted out of the forward

    mu_ref, sigma_ref = reference_forward(x, params)

    # Exact-parity f32 path.
    mu, sigma = jax.block_until_ready(
        policy_forward(x, slab, state_space=state_space, hidden=hidden,
                       use_bf16=False))
    assert mu.shape == (batch, 1) and sigma.shape == (batch, 1)
    assert jnp.allclose(mu, mu_ref, atol=1e-5, rtol=1e-5)
    assert jnp.allclose(sigma, sigma_ref, atol=1e-5, rtol=1e-5)

    # bf16 MXU-operand fast path (v5e/v6e/v7x); relaxed tolerance per review.
    mu_b, sigma_b = jax.block_until_ready(
        policy_forward(x, slab, state_space=state_space, hidden=hidden,
                       use_bf16=True))
    assert jnp.allclose(mu_b, mu_ref, atol=5e-2, rtol=5e-2)
    assert jnp.allclose(sigma_b, sigma_ref, atol=5e-2, rtol=5e-2)

    print("KERNEL_OK")
</pallas_src>

<mosaic_0001>
module attributes {stable_mosaic.version = 11 : i64} {
  func.func @_policy_kernel(%arg0: i32, %arg1: memref<2x128xf32, #tpu.memory_space<vmem>>, %arg2: memref<24x128xf32, #tpu.memory_space<vmem>>, %arg3: memref<2x128xf32, #tpu.memory_space<vmem>>) attributes {dimension_semantics = [#tpu.dimension_semantics<parallel>], iteration_bounds = array<i64: 1>, scalar_prefetch = 0 : i64, scratch_operands = 0 : i64, tpu.core_type = #tpu.core_type<tc>, window_params = [{transform_indices = @transform_0, window_bounds = array<i64: 2, 128>}, {pipeline_mode = #tpu.pipeline_mode<synchronous>, transform_indices = @transform_1, window_bounds = array<i64: 24, 128>}, {transform_indices = @transform_2, window_bounds = array<i64: 2, 128>}]} {
    %c0 = arith.constant 0 : index
    %c0_0 = arith.constant 0 : index
    %0 = vector.load %arg1[%c0, %c0_0] : memref<2x128xf32, #tpu.memory_space<vmem>>, vector<2x128xf32>
    %c0_1 = arith.constant 0 : index
    %c22 = arith.constant 22 : index
    %1 = vector.load %arg2[%c0_1, %c22] : memref<24x128xf32, #tpu.memory_space<vmem>>, vector<20x1xf32>
    %c0_2 = arith.constant 0 : index
    %c20 = arith.constant 20 : index
    %2 = vector.load %arg2[%c0_2, %c20] : memref<24x128xf32, #tpu.memory_space<vmem>>, vector<20x1xf32>
    %3 = vector.extract_strided_slice %0 {offsets = [0, 0], sizes = [1, 128], strides = [1, 1]} : vector<2x128xf32> to vector<1x128xf32>
    %4 = vector.broadcast %2 : vector<20x1xf32> to vector<20x128xf32>
    %5 = vector.broadcast %3 : vector<1x128xf32> to vector<20x128xf32>
    %6 = arith.mulf %4, %5 : vector<20x128xf32>
    %7 = vector.broadcast %1 : vector<20x1xf32> to vector<20x128xf32>
    %8 = arith.addf %7, %6 : vector<20x128xf32>
    %c0_3 = arith.constant 0 : index
    %c21 = arith.constant 21 : index
    %9 = vector.load %arg2[%c0_3, %c21] : memref<24x128xf32, #tpu.memory_space<vmem>>, vector<20x1xf32>
    %10 = vector.extract_strided_slice %0 {offsets = [1, 0], sizes = [1, 128], strides = [1, 1]} : vector<2x128xf32> to vector<1x128xf32>
    %11 = vector.broadcast %9 : vector<20x1xf32> to vector<20x128xf32>
    %12 = vector.broadcast %10 : vector<1x128xf32> to vector<20x128xf32>
    %13 = arith.mulf %11, %12 : vector<20x128xf32>
    %14 = arith.addf %8, %13 : vector<20x128xf32>
    %cst = arith.constant 0.000000e+00 : f32
    %15 = vector.broadcast %cst : f32 to vector<20x128xf32>
    %16 = arith.maximumf %14, %15 : vector<20x128xf32>
    %c0_4 = arith.constant 0 : index
    %c0_5 = arith.constant 0 : index
    %17 = vector.load %arg2[%c0_4, %c0_5] : memref<24x128xf32, #tpu.memory_space<vmem>>, vector<20x20xf32>
    %c0_6 = arith.constant 0 : index
    %c23 = arith.constant 23 : index
    %18 = vector.load %arg2[%c0_6, %c23] : memref<24x128xf32, #tpu.memory_space<vmem>>, vector<20x1xf32>
    %cst_7 = arith.constant dense<0.000000e+00> : vector<20x128xf32>
    %19 = tpu.matmul %17, %16, %cst_7 {dimension_numbers = #tpu.dot_dimension_numbers<[1], [0], [0], [1], [0, 0, 1, 1], [], []>} : vector<20x20xf32>, vector<20x128xf32>, vector<20x128xf32> -> vector<20x128xf32>
    %20 = vector.broadcast %18 : vector<20x1xf32> to vector<20x128xf32>
    %21 = arith.addf %19, %20 : vector<20x128xf32>
    %cst_8 = arith.constant 0.000000e+00 : f32
    %22 = vector.broadcast %cst_8 : f32 to vector<20x128xf32>
    %23 = arith.maximumf %21, %22 : vector<20x128xf32>
    %c20_9 = arith.constant 20 : index
    %c0_10 = arith.constant 0 : index
    %24 = vector.load %arg2[%c20_9, %c0_10] : memref<24x128xf32, #tpu.memory_space<vmem>>, vector<2x20xf32>
    %c20_11 = arith.constant 20 : index
    %c20_12 = arith.constant 20 : index
    %25 = vector.load %arg2[%c20_11, %c20_12] : memref<24x128xf32, #tpu.memory_space<vmem>>, vector<2x1xf32>
    %cst_13 = arith.constant dense<0.000000e+00> : vector<2x128xf32>
    %26 = tpu.matmul %24, %23, %cst_13 {dimension_numbers = #tpu.dot_dimension_numbers<[1], [0], [0], [1], [0, 0, 1, 1], [], []>} : vector<2x20xf32>, vector<20x128xf32>, vector<2x128xf32> -> vector<2x128xf32>
    %27 = vector.broadcast %25 : vector<2x1xf32> to vector<2x128xf32>
    %28 = arith.addf %26, %27 : vector<2x128xf32>
    %29 = vector.extract_strided_slice %28 {offsets = [0, 0], sizes = [1, 128], strides = [1, 1]} : vector<2x128xf32> to vector<1x128xf32>
    %30 = math.tanh %29 : vector<1x128xf32>
    %c0_14 = arith.constant 0 : index
    %c0_15 = arith.constant 0 : index
    %31 = vector.load %arg3[%c0_14, %c0_15] : memref<2x128xf32, #tpu.memory_space<vmem>>, vector<1x128xf32>
    tpu.vector_store %arg3[%c0_14, %c0_15], %30 {strides = array<i32>} : memref<2x128xf32, #tpu.memory_space<vmem>>, vector<1x128xf32>,
    %32 = vector.extract_strided_slice %28 {offsets = [1, 0], sizes = [1, 128], strides = [1, 1]} : vector<2x128xf32> to vector<1x128xf32>
    %cst_16 = arith.constant 2.000000e+01 : f32
    %33 = vector.broadcast %cst_16 : f32 to vector<1x128xf32>
    %34 = arith.cmpf ogt, %32, %33 : vector<1x128xf32>
    %cst_17 = arith.constant 2.000000e+01 : f32
    %35 = vector.broadcast %cst_17 : f32 to vector<1x128xf32>
    %36 = arith.minimumf %32, %35 : vector<1x128xf32>
    %37 = math.exp %36 : vector<1x128xf32>
    %38 = math.log1p %37 : vector<1x128xf32>
    %39 = arith.select %34, %32, %38 : vector<1x128xi1>, vector<1x128xf32>
    %c1 = arith.constant 1 : index
    %c0_18 = arith.constant 0 : index
    %40 = vector.load %arg3[%c1, %c0_18] : memref<2x128xf32, #tpu.memory_space<vmem>>, vector<1x128xf32>
    tpu.vector_store %arg3[%c1, %c0_18], %39 {strides = array<i32>} : memref<2x128xf32, #tpu.memory_space<vmem>>, vector<1x128xf32>,
    return
  }
  func.func @transform_0(%arg0: i32) -> (i32, i32) {
    %c0_i32 = arith.constant 0 : i32
    %c0_i32_0 = arith.constant 0 : i32
    return %c0_i32, %arg0 : i32, i32
  }
  func.func @transform_1(%arg0: i32) -> (i32, i32) {
    %c0_i32 = arith.constant 0 : i32
    %c0_i32_0 = arith.constant 0 : i32
    %c0_i32_1 = arith.constant 0 : i32
    return %c0_i32, %c0_i32_0 : i32, i32
  }
  func.func @transform_2(%arg0: i32) -> (i32, i32) {
    %c0_i32 = arith.constant 0 : i32
    %c0_i32_0 = arith.constant 0 : i32
    return %c0_i32, %arg0 : i32, i32
  }
}

</mosaic_0001>

<llo_original>
// kernel: policy_forward.1
$region0: #{policy_forward.1}
  #allocation0 [shape = 'u32[]', space=smem, size = 0x4, offset = 0x4, fixed_abs, tag = 'smem constant byte address 0x4 - core index']
  #allocation1 [shape = 'u32[144,128]{1,0:T(1,128)}', space=vmem, size = 0x12000, scoped, tag = 'internal scratch']
  %s0 = inlined_call_operand.vmem [shape: f32[2,128], index: 0, kind: input, shape index: {}]
  %s1 = inlined_call_operand.hbm [shape: f32[24,128], index: 1, kind: input, shape index: {}]
  %s2 = inlined_call_operand.vmem [shape: f32[2,128], index: 2, kind: output, shape index: {}]
  %s3 = sld [smem:[#allocation0]]
  $region22: #{policy_forward.1} parent=0
    _
  %s5 = ssub.s32 1, %s3
  %s6 = scalar_select 0, %s5, %s3
  $region1: #{policy_forward.1} parent=0
    #allocation2 [shape = 'u8[12288]{0}', space=vmem, size = 0x3000, scoped, tag = 'input window, operand 1, single buffered']
    #allocation3 [shape = 's32[1]{0}', space=sflag, size = 0x4, scoped, tag = 'scoped memory for policy_forward.1']
    %7 = vsyncpa [#allocation3], 0
    // Predicated region
    $region2: #{policy_forward.1} parent=1 // pred_check
      _
    $region3: #{policy_forward.1} parent=1 // pred_check_branch
      %9 = sbr.rel (0) target = $region5
    $region4: #{policy_forward.1} parent=1 // pred_region
      _
    $region5: #{policy_forward.1} parent=1 // pred_fallthru
      _
    // Predicated region
    $region6: #{policy_forward.1} parent=1 // pred_check
      _
    $region7: #{policy_forward.1} parent=1 // pred_check_branch
      %11 = sbr.rel (0) target = $region9
    $region8: #{policy_forward.1} parent=1 // pred_region
      %s13 = ssub.s32 384, 384
      %14 = vsyncadd [#allocation3], %s13
      %s15 = sshll.u32 [#allocation2], 4
      %s16 = int_to_ptr.vmem [resolvable:$true] %s15
      %21 = dma.hbm_to_vmem [thread:$0]  %s1, 384, %s16, [#allocation3], 128, 128, 8
    $region9: #{policy_forward.1} parent=1 // pred_fallthru
      _
    // Predicated region
    $region10: #{policy_forward.1} parent=1 // pred_check
      _
    $region11: #{policy_forward.1} parent=1 // pred_check_branch
      %23 = sbr.rel (0) target = $region13
    $region12: #{policy_forward.1} parent=1 // pred_region
      %24 = dma.done [#allocation3], 384
    $region13: #{policy_forward.1} parent=1 // pred_fallthru
      _
    %v25 = vld [vmem:[%s0] sm:$0x3]
    %v26 = vld [vmem:[#allocation2] sm:$0xff]
    %v27 = vld [vmem:[#allocation2 + $0x8] sm:$0xff]
    %v28 = vld [vmem:[#allocation2 + $0x10] sm:$0xf]
    %30 = vset.pattern.permute.xlu0 20
    %31 = vperm.xlu0 %30, %v26
    %v32 = vpop.permute.xlu0 %31
    %35 = vset.pattern.permute.xlu0 20
    %36 = vperm.xlu0 %35, %v27
    %v37 = vpop.permute.xlu0 %36
    %40 = vset.pattern.permute.xlu0 20
    %41 = vperm.xlu0 %40, %v28
    %v42 = vpop.permute.xlu0 %41
    %v44 = vlaneseq
    %v45 = vshrl.u32 %v44, 7
    %v46 = vsub.s32 0, %v45
    %v47 = vrot.slane %v25, %v46
    %v48 = vmul.f32 %v32, %v47
    %v49 = vmul.f32 %v37, %v47
    %v50 = vmul.f32 %v42, %v47
    %51 = vset.pattern.permute.xlu0 22
    %52 = vperm.xlu0 %51, %v26
    %v53 = vpop.permute.xlu0 %52
    %55 = vset.pattern.permute.xlu0 22
    %56 = vperm.xlu0 %55, %v27
    %v57 = vpop.permute.xlu0 %56
    %59 = vset.pattern.permute.xlu0 22
    %60 = vperm.xlu0 %59, %v28
    %v61 = vpop.permute.xlu0 %60
    %v63 = vadd.f32 %v53, %v48
    %v64 = vadd.f32 %v57, %v49
    %v65 = vadd.f32 %v61, %v50
    %66 = vset.pattern.permute.xlu0 21
    %67 = vperm.xlu0 %66, %v26
    %v68 = vpop.permute.xlu0 %67
    %70 = vset.pattern.permute.xlu0 21
    %71 = vperm.xlu0 %70, %v27
    %v72 = vpop.permute.xlu0 %71
    %74 = vset.pattern.permute.xlu0 21
    %75 = vperm.xlu0 %74, %v28
    %v76 = vpop.permute.xlu0 %75
    %v78 = vlaneseq
    %v79 = vshrl.u32 %v78, 7
    %v80 = vsub.s32 1, %v79
    %v81 = vrot.slane %v25, %v80
    %v82 = vmul.f32 %v68, %v81
    %v83 = vmul.f32 %v72, %v81
    %v84 = vmul.f32 %v76, %v81
    %v85 = vadd.f32 %v63, %v82
    %v86 = vadd.f32 %v64, %v83
    %v87 = vadd.f32 %v65, %v84
    %v88 = vmax.f32 %v85, 0.0
    %v89 = vmax.f32 %v86, 0.0
    %v90 = vmax.f32 %v87, 0.0
    %91 = vset.pattern.permute.xlu0 23
    %92 = vperm.xlu0 %91, %v26
    %v93 = vpop.permute.xlu0 %92
    %95 = vset.pattern.permute.xlu0 23
    %96 = vperm.xlu0 %95, %v27
    %v97 = vpop.permute.xlu0 %96
    %99 = vset.pattern.permute.xlu0 23
    %100 = vperm.xlu0 %99, %v28
    %v101 = vpop.permute.xlu0 %100
    %vm103 = vcmask 162816
    %v104 = vsel %vm103, %v26, 0
    %v106 = vsel %vm103, %v27, 0
    %v108 = vsel %vm103, %v28, 0
    %vm110 = vcmask 1043456
    %v112 = vsel %vm110, %v90, 0
    %114 = vmatprep.subr.mxu0 0.0
    %115 = vmatpush1.msra.mxu0 0.0
    %116 = vmatprep.subr.mxu0 0.0
    %117 = vmatpush1.msra.mxu0 0.0
    %118 = vmatprep.subr.mxu0 0.0
    %119 = vmatpush1.msra.mxu0 0.0
    %120 = vmatprep.subr.mxu0 0.0
    %121 = vmatpush1.msra.mxu0 0.0
    %122 = vmatprep.subr.mxu0 0.0
    %123 = vmatpush1.msra.mxu0 0.0
    %124 = vmatprep.subr.mxu0 0.0
    %125 = vmatpush1.msra.mxu0 0.0
    %126 = vmatprep.subr.mxu0 0.0
    %127 = vmatpush1.msra.mxu0 0.0
    %128 = vmatprep.subr.mxu0 0.0
    %129 = vmatpush1.msra.mxu0 0.0
    %130 = vmatprep.subr.mxu0 0.0
    %131 = vmatpush1.msra.mxu0 0.0
    %132 = vmatprep.subr.mxu0 0.0
    %133 = vmatpush1.msra.mxu0 0.0
    %134 = vmatprep.subr.mxu0 0.0
    %135 = vmatpush1.msra.mxu0 0.0
    %136 = vmatprep.subr.mxu0 0.0
    %137 = vmatpush1.msra.mxu0 0.0
    %138 = vmatprep.subr.mxu0 0.0
    %139 = vmatpush1.msra.mxu0 0.0
    %140 = vmatprep.subr.mxu0 0.0
    %141 = vmatpush1.msra.mxu0 %v112
    %142 = vmatprep.subr.mxu0 0.0
    %143 = vmatpush1.msra.mxu0 %v89
    %144 = vmatprep.subr.mxu0 0.0
    %145 = vmatpush1.msra.mxu0 %v88
    %146 = vmatprep.subr.mxu0 0.0
    %147 = vmatpush2.msra.mxu0 0.0
    %148 = vmatprep.subr.mxu0 0.0
    %149 = vmatpush2.msra.mxu0 0.0
    %150 = vmatprep.subr.mxu0 0.0
    %151 = vmatpush2.msra.mxu0 0.0
    %152 = vmatprep.subr.mxu0 0.0
    %153 = vmatpush2.msra.mxu0 0.0
    %154 = vmatprep.subr.mxu0 0.0
    %155 = vmatpush2.msra.mxu0 0.0
    %156 = vmatprep.subr.mxu0 0.0
    %157 = vmatpush2.msra.mxu0 0.0
    %158 = vmatprep.subr.mxu0 0.0
    %159 = vmatpush2.msra.mxu0 0.0
    %160 = vmatprep.subr.mxu0 0.0
    %161 = vmatpush2.msra.mxu0 0.0
    %162 = vmatprep.subr.mxu0 0.0
    %163 = vmatpush2.msra.mxu0 0.0
    %164 = vmatprep.subr.mxu0 0.0
    %165 = vmatpush2.msra.mxu0 0.0
    %166 = vmatprep.subr.mxu0 0.0
    %167 = vmatpush2.msra.mxu0 0.0
    %168 = vmatprep.subr.mxu0 0.0
    %169 = vmatpush2.msra.mxu0 0.0
    %170 = vmatprep.subr.mxu0 0.0
    %171 = vmatpush2.msra.mxu0 0.0
    %172 = vmatprep.subr.mxu0 0.0
    %173 = vmatpush2.msra.mxu0 0.0
    %174 = vmatprep.subr.mxu0 0.0
    %175 = vmatpush2.msra.mxu0 0.0
    %176 = vmatprep.subr.mxu0 0.0
    %177 = vmatpush2.msra.mxu0 0.0
    %178 = vmatprep.mubr.f32.mxu0 0.0
    %179 = vmatmul.mubr.f32.gmra.mxu0 %v104
    %v180 = vpop.f32.mrf.mxu0
    %v181 = vadd.f32 %v93, %v180
    %v182 = vpop.f32.mrf.mxu0
    %183 = vmatprep.mubr.f32.mxu0 0.0
    %184 = vmatmul.mubr.f32.gmra.mxu0 %v106
    %v185 = vpop.f32.mrf.mxu0
    %v186 = vadd.f32 %v97, %v185
    %v187 = vpop.f32.mrf.mxu0
    %188 = vmatprep.mubr.f32.mxu0 0.0
    %189 = vmatmul.mubr.f32.gmra.mxu0 %v108
    %v190 = vpop.f32.mrf.mxu0
    %v191 = vadd.f32 %v101, %v190
    %v192 = vpop.f32.mrf.mxu0
    %193 = vdwg.mxu0
    %v194 = vmax.f32 %v181, 0.0
    %v195 = vmax.f32 %v186, 0.0
    %v196 = vmax.f32 %v191, 0.0
    %v197 = vld [vmem:[#allocation2 + $0x14] sm:$0x3]
    %199 = vset.pattern.permute.xlu0 20
    %200 = vperm.xlu0 %199, %v197
    %v201 = vpop.permute.xlu0 %200
    %v203 = vsel %vm103, %v197, 0
    %v206 = vsel %vm110, %v196, 0
    %208 = vmatprep.subr.mxu0 0.0
    %209 = vmatpush1.msra.mxu0 0.0
    %210 = vmatprep.subr.mxu0 0.0
    %211 = vmatpush1.msra.mxu0 0.0
    %212 = vmatprep.subr.mxu0 0.0
    %213 = vmatpush1.msra.mxu0 0.0
    %214 = vmatprep.subr.mxu0 0.0
    %215 = vmatpush1.msra.mxu0 0.0
    %216 = vmatprep.subr.mxu0 0.0
    %217 = vmatpush1.msra.mxu0 0.0
    %218 = vmatprep.subr.mxu0 0.0
    %219 = vmatpush1.msra.mxu0 0.0
    %220 = vmatprep.subr.mxu0 0.0
    %221 = vmatpush1.msra.mxu0 0.0
    %222 = vmatprep.subr.mxu0 0.0
    %223 = vmatpush1.msra.mxu0 0.0
    %224 = vmatprep.subr.mxu0 0.0
    %225 = vmatpush1.msra.mxu0 0.0
    %226 = vmatprep.subr.mxu0 0.0
    %227 = vmatpush1.msra.mxu0 0.0
    %228 = vmatprep.subr.mxu0 0.0
    %229 = vmatpush1.msra.mxu0 0.0
    %230 = vmatprep.subr.mxu0 0.0
    %231 = vmatpush1.msra.mxu0 0.0
    %232 = vmatprep.subr.mxu0 0.0
    %233 = vmatpush1.msra.mxu0 0.0
    %234 = vmatprep.subr.mxu0 0.0
    %235 = vmatpush1.msra.mxu0 %v206
    %236 = vmatprep.subr.mxu0 0.0
    %237 = vmatpush1.msra.mxu0 %v195
    %238 = vmatprep.subr.mxu0 0.0
    %239 = vmatpush1.msra.mxu0 %v194
    %240 = vmatprep.subr.mxu0 0.0
    %241 = vmatpush2.msra.mxu0 0.0
    %242 = vmatprep.subr.mxu0 0.0
    %243 = vmatpush2.msra.mxu0 0.0
    %244 = vmatprep.subr.mxu0 0.0
    %245 = vmatpush2.msra.mxu0 0.0
    %246 = vmatprep.subr.mxu0 0.0
    %247 = vmatpush2.msra.mxu0 0.0
    %248 = vmatprep.subr.mxu0 0.0
    %249 = vmatpush2.msra.mxu0 0.0
    %250 = vmatprep.subr.mxu0 0.0
    %251 = vmatpush2.msra.mxu0 0.0
    %252 = vmatprep.subr.mxu0 0.0
    %253 = vmatpush2.msra.mxu0 0.0
    %254 = vmatprep.subr.mxu0 0.0
    %255 = vmatpush2.msra.mxu0 0.0
    %256 = vmatprep.subr.mxu0 0.0
    %257 = vmatpush2.msra.mxu0 0.0
    %258 = vmatprep.subr.mxu0 0.0
    %259 = vmatpush2.msra.mxu0 0.0
    %260 = vmatprep.subr.mxu0 0.0
    %261 = vmatpush2.msra.mxu0 0.0
    %262 = vmatprep.subr.mxu0 0.0
    %263 = vmatpush2.msra.mxu0 0.0
    %264 = vmatprep.subr.mxu0 0.0
    %265 = vmatpush2.msra.mxu0 0.0
    %266 = vmatprep.subr.mxu0 0.0
    %267 = vmatpush2.msra.mxu0 0.0
    %268 = vmatprep.subr.mxu0 0.0
    %269 = vmatpush2.msra.mxu0 0.0
    %270 = vmatprep.subr.mxu0 0.0
    %271 = vmatpush2.msra.mxu0 0.0
    %272 = vmatprep.mubr.f32.mxu0 0.0
    %273 = vmatmul.mubr.f32.gmra.mxu0 %v203
    %v274 = vpop.f32.mrf.mxu0
    %v275 = vadd.f32 %v201, %v274
    %v276 = vpop.f32.mrf.mxu0
    %277 = vdwg.mxu0
    %v278 = vtanh.pop %v275
    %279 = vst [vmem:[%s2] sm:$0x1] %v278
    %vm280 = vcmp.gt.f32.partialorder %v275, 20.0
    %v281 = vmin.f32 %v275, 20.0
    %v282 = vmul.f32 %v281, 1.442695
    %v283 = vpow.pop %v282
    %v284 = vadd.f32 %v283, 1.0
    %v285 = vlog2.pop %v284
    %v286 = vmul.f32 %v285, 0.6931472
    %v287 = vmul.f32 -0.5, %v283
    %v288 = vadd.f32 %v287, 1.0
    %v289 = vmul.f32 %v288, %v283
    %v290 = vand.u32 2147483647, %v283
    %vm291 = vcmp.lt.f32.partialorder %v290, 0.0004427343
    %v292 = vsel %vm291, %v289, %v286
    %v293 = vsel %vm280, %v275, %v292
    %294 = vst [vmem:[%s2] sm:$0x2] %v293
    // Predicated region
    $region14: #{policy_forward.1} parent=1 // pred_check
      _
    $region15: #{policy_forward.1} parent=1 // pred_check_branch
      %296 = sbr.rel (0) target = $region17
    $region16: #{policy_forward.1} parent=1 // pred_region
      _
    $region17: #{policy_forward.1} parent=1 // pred_fallthru
      _
    // Predicated region
    $region18: #{policy_forward.1} parent=1 // pred_check
      _
    $region19: #{policy_forward.1} parent=1 // pred_check_branch
      %298 = sbr.rel (0) target = $region21
    $region20: #{policy_forward.1} parent=1 // pred_region
      _
    $region21: #{policy_forward.1} parent=1 // pred_fallthru
      _
    %299 = vsyncpa [#allocation3], 1

</llo_original>
